<compile_context>
chip_gen: v7x
topology: tpu7x:2x2x1
jax: 0.10.0
libtpu: 0.0.40
codegen_flags: <defaults>
</compile_context>

<pallas_src>
import functools

import jax
import jax.numpy as jnp
from jax.experimental import pallas as pl
from jax.experimental.pallas import tpu as pltpu

EPS = 1e-6


def _round_up(n, m):
    return ((n + m - 1) // m) * m


def encoder_layer_kernel(x_ref, w0_ref, b0_ref, w1_ref, b1_ref, o_ref):
    """One row tile: out = h + LN(h)@W1' + b1',  h = x + LN(x)@W0' + b0'.

    W' (bf16) / b' (f32) have gamma/beta pre-folded, so the in-kernel LayerNorm is
    only mean / unbiased-std normalization (torch semantics: ddof=1, eps added to
    std outside the sqrt). All math is row-local -> partial last block is safe.
    """
    x = x_ref[...].astype(jnp.float32)            # (TR, D) residual stream, f32
    d = x.shape[-1]

    def ln_linear(h, w_ref, b_ref):
        mean = jnp.mean(h, axis=-1, keepdims=True)
        diff = h - mean
        var = jnp.sum(diff * diff, axis=-1, keepdims=True) * (1.0 / (d - 1))
        inv = 1.0 / (jnp.sqrt(var) + EPS)          # exact (no approx reciprocal)
        z = (diff * inv).astype(jnp.bfloat16)      # bf16 MXU operand, f32 accumulate
        y = jnp.dot(z, w_ref[...], preferred_element_type=jnp.float32)
        return y + b_ref[...]

    h = x + ln_linear(x, w0_ref, b0_ref)           # sublayer[0]: x + attn(LN(x))
    o = h + ln_linear(h, w1_ref, b1_ref)           # sublayer[1]: h + ff(LN(h))
    o_ref[...] = o.astype(o_ref.dtype)             # dropout (eval) = identity


@functools.partial(jax.jit, static_argnames=("tile_rows",))
def _encoder_layer_rows(x2d, w0, b0, w1, b1, *, tile_rows=1024):
    """x2d: (R, D) f32 rows. wN: (D, D) bf16 folded. bN: (1, D) f32 folded."""
    n_rows, d = x2d.shape
    assert d > 1, "unbiased std is degenerate for feature dim 1"

    # Big 8-aligned row tiles (amortize ~0.35us/step), but keep >= 2 grid steps when
    # possible so the "parallel" axis feeds both v7x TensorCores. Partial last block
    # is handled by Pallas masking (no pad / no slice copies).
    tile = max(8, min(_round_up(tile_rows, 8), _round_up(pl.cdiv(n_rows, 2), 8)))
    grid = pl.cdiv(n_rows, tile)

    # VMEM @ D=128, tile=1024: x/out tiles 2*2*512KiB + 2 resident bf16 W (32KiB ea,
    # double-buffered) + biases  ~2.3 MiB -> well inside every generation's default.
    return pl.pallas_call(
        encoder_layer_kernel,
        out_shape=jax.ShapeDtypeStruct((n_rows, d), x2d.dtype),
        grid_spec=pltpu.PrefetchScalarGridSpec(
            num_scalar_prefetch=0,
            grid=(grid,),
            in_specs=[
                pl.BlockSpec((tile, d), lambda i: (i, 0)),  # x row tile
                pl.BlockSpec((d, d), lambda i: (0, 0)),     # W0' (bf16), resident
                pl.BlockSpec((1, d), lambda i: (0, 0)),     # b0' (f32), resident
                pl.BlockSpec((d, d), lambda i: (0, 0)),     # W1' (bf16), resident
                pl.BlockSpec((1, d), lambda i: (0, 0)),     # b1' (f32), resident
            ],
            out_specs=pl.BlockSpec((tile, d), lambda i: (i, 0)),
        ),
        compiler_params=pltpu.CompilerParams(
            dimension_semantics=("parallel",),  # row tiles shard across TCs (v7x)
        ),
    )(x2d, w0, b0, w1, b1)


def fold_layernorm_into_linear(gamma, beta, w, b):
    """W' = gamma[:,None] * W (bf16 MXU operand), b' = b + beta @ W (f32, (1,D))."""
    w_folded = (gamma[:, None] * w).astype(jnp.bfloat16)
    b_folded = b + jnp.dot(beta, w, precision=jax.lax.Precision.HIGHEST)
    return w_folded, b_folded.reshape(1, -1).astype(jnp.float32)


def fold_encoder_layer_params(attn_params, ff_params):
    """Precompute folded params ONCE (hoisted out of the per-forward hot path)."""
    w0, b0 = fold_layernorm_into_linear(*attn_params)
    w1, b1 = fold_layernorm_into_linear(*ff_params)
    return w0, b0, w1, b1


def encoder_layer_apply(x, folded_params, mask=None, *, tile_rows=1024):
    """EncoderLayer.forward(x, mask) on pre-folded params. x: (B, S, D)."""
    del mask  # TODO(synk): mask only feeds the injected self_attn callable.
    B, S, D = x.shape
    w0, b0, w1, b1 = folded_params
    out = _encoder_layer_rows(x.reshape(B * S, D), w0, b0, w1, b1, tile_rows=tile_rows)
    return out.reshape(B, S, D)


def encoder_layer(x, attn_params, ff_params, mask=None, *, tile_rows=1024):
    """Convenience wrapper that folds params then applies (prefer hoisting the fold)."""
    return encoder_layer_apply(x, fold_encoder_layer_params(attn_params, ff_params),
                               mask, tile_rows=tile_rows)


# ----------------------------- references -----------------------------------------
def _layer_norm_ref(x, gamma, beta):
    mean = jnp.mean(x, axis=-1, keepdims=True)
    diff = x - mean
    var = jnp.sum(diff * diff, axis=-1, keepdims=True) / (x.shape[-1] - 1)
    return gamma * diff / (jnp.sqrt(var) + EPS) + beta


def sublayer_reference_f32(x, gamma, beta, w, b):
    """Exact PyTorch-module semantics with a full-precision f32 matmul."""
    normed = _layer_norm_ref(x, gamma, beta)
    return x + (jnp.dot(normed, w, precision=jax.lax.Precision.HIGHEST) + b)


def sublayer_reference_mimic(x, w_folded, b_folded):
    """Same math as the kernel: folded params, exact inv-std, bf16 MXU operands."""
    d = x.shape[-1]
    mean = jnp.mean(x, axis=-1, keepdims=True)
    diff = x - mean
    var = jnp.sum(diff * diff, axis=-1, keepdims=True) * (1.0 / (d - 1))
    inv = 1.0 / (jnp.sqrt(var) + EPS)
    z = (diff * inv).astype(jnp.bfloat16)
    return x + (jnp.dot(z, w_folded, preferred_element_type=jnp.float32) + b_folded)


if __name__ == "__main__":
    B, S, D = 2, 8, 128  # batch, seq, hidden (= EncoderLayer size)
    key = jax.random.PRNGKey(0)
    kx, kg0, kb0, kw0, kc0, kg1, kb1, kw1, kc1 = jax.random.split(key, 9)

    x = jax.random.normal(kx, (B, S, D), dtype=jnp.float32)
    mask = jnp.ones((B, 1, S, S), dtype=jnp.float32)  # unused by the Linear stand-in

    def make_params(kg, kb, kw, kc):
        gamma = 1.0 + 0.1 * jax.random.normal(kg, (D,), jnp.float32)
        beta = 0.05 * jax.random.normal(kb, (D,), jnp.float32)
        w = jax.random.normal(kw, (D, D), jnp.float32) * (1.0 / jnp.sqrt(D))
        b = 0.01 * jax.random.normal(kc, (D,), jnp.float32)
        return gamma, beta, w, b

    attn_params = make_params(kg0, kb0, kw0, kc0)  # stand-in for self_attn
    ff_params = make_params(kg1, kb1, kw1, kc1)    # stand-in for feed_forward

    folded = fold_encoder_layer_params(attn_params, ff_params)  # hoisted, once
    out = encoder_layer_apply(x, folded, mask)
    out = jax.block_until_ready(out)
    assert out.shape == (B, S, D)

    # Check vs a reference doing the same folded / bf16-operand computation.
    w0f, b0f, w1f, b1f = folded
    ref_mimic = sublayer_reference_mimic(sublayer_reference_mimic(x, w0f, b0f), w1f, b1f)
    assert jnp.allclose(out, ref_mimic, atol=2e-2, rtol=2e-2), "mismatch vs bf16 reference"

    # Loose sanity check vs exact f32 module semantics (delta = intentional bf16
    # rounding of the MXU operands); catches structural bugs (fold/residual/LN).
    ref_f32 = sublayer_reference_f32(sublayer_reference_f32(x, *attn_params), *ff_params)
    assert jnp.allclose(out, ref_f32, atol=1e-1, rtol=1e-1), "mismatch vs f32 reference"

    print("KERNEL_OK")
</pallas_src>

<mosaic_0001>
module attributes {stable_mosaic.version = 11 : i64} {
  func.func @encoder_layer_kernel(%arg0: i32, %arg1: memref<8x128xf32, #tpu.memory_space<vmem>>, %arg2: memref<128x128xbf16, #tpu.memory_space<vmem>>, %arg3: memref<1x128xf32, #tpu.memory_space<vmem>>, %arg4: memref<128x128xbf16, #tpu.memory_space<vmem>>, %arg5: memref<1x128xf32, #tpu.memory_space<vmem>>, %arg6: memref<8x128xf32, #tpu.memory_space<vmem>>) attributes {dimension_semantics = [#tpu.dimension_semantics<parallel>], iteration_bounds = array<i64: 2>, scalar_prefetch = 0 : i64, scratch_operands = 0 : i64, tpu.core_type = #tpu.core_type<tc>, window_params = [{transform_indices = @transform_0, window_bounds = array<i64: 8, 128>}, {pipeline_mode = #tpu.pipeline_mode<synchronous>, transform_indices = @transform_1, window_bounds = array<i64: 128, 128>}, {pipeline_mode = #tpu.pipeline_mode<synchronous>, transform_indices = @transform_2, window_bounds = array<i64: 1, 128>}, {pipeline_mode = #tpu.pipeline_mode<synchronous>, transform_indices = @transform_3, window_bounds = array<i64: 128, 128>}, {pipeline_mode = #tpu.pipeline_mode<synchronous>, transform_indices = @transform_4, window_bounds = array<i64: 1, 128>}, {transform_indices = @transform_5, window_bounds = array<i64: 8, 128>}]} {
    %c0 = arith.constant 0 : index
    %c0_0 = arith.constant 0 : index
    %0 = vector.load %arg1[%c0, %c0_0] : memref<8x128xf32, #tpu.memory_space<vmem>>, vector<8x128xf32>
    %cst = arith.constant dense<0.000000e+00> : vector<8xf32>
    %1 = vector.multi_reduction <add>, %0, %cst [1] : vector<8x128xf32> to vector<8xf32>
    %2 = vector.shape_cast %1 : vector<8xf32> to vector<8x1xf32>
    %cst_1 = arith.constant 1.280000e+02 : f32
    %3 = vector.broadcast %cst_1 : f32 to vector<8x1xf32>
    %4 = arith.divf %2, %3 : vector<8x1xf32>
    %5 = vector.broadcast %4 : vector<8x1xf32> to vector<8x128xf32>
    %6 = arith.subf %0, %5 : vector<8x128xf32>
    %7 = arith.mulf %6, %6 : vector<8x128xf32>
    %cst_2 = arith.constant dense<0.000000e+00> : vector<8xf32>
    %8 = vector.multi_reduction <add>, %7, %cst_2 [1] : vector<8x128xf32> to vector<8xf32>
    %9 = vector.shape_cast %8 : vector<8xf32> to vector<8x1xf32>
    %cst_3 = arith.constant 0.00787401571 : f32
    %10 = vector.broadcast %cst_3 : f32 to vector<8x1xf32>
    %11 = arith.mulf %9, %10 : vector<8x1xf32>
    %12 = math.sqrt %11 : vector<8x1xf32>
    %cst_4 = arith.constant 9.99999997E-7 : f32
    %13 = vector.broadcast %cst_4 : f32 to vector<8x1xf32>
    %14 = arith.addf %12, %13 : vector<8x1xf32>
    %cst_5 = arith.constant 1.000000e+00 : f32
    %15 = vector.broadcast %cst_5 : f32 to vector<8x1xf32>
    %16 = arith.divf %15, %14 : vector<8x1xf32>
    %17 = vector.broadcast %16 : vector<8x1xf32> to vector<8x128xf32>
    %18 = arith.mulf %6, %17 : vector<8x128xf32>
    %19 = arith.truncf %18 : vector<8x128xf32> to vector<8x128xbf16>
    %c0_6 = arith.constant 0 : index
    %c0_7 = arith.constant 0 : index
    %20 = vector.load %arg2[%c0_6, %c0_7] : memref<128x128xbf16, #tpu.memory_space<vmem>>, vector<128x128xbf16>
    %cst_8 = arith.constant dense<0.000000e+00> : vector<8x128xf32>
    %21 = tpu.matmul %19, %20, %cst_8 {dimension_numbers = #tpu.dot_dimension_numbers<[1], [0], [0], [1], [0, 0, 1, 1], [], []>} : vector<8x128xbf16>, vector<128x128xbf16>, vector<8x128xf32> -> vector<8x128xf32>
    %c0_9 = arith.constant 0 : index
    %c0_10 = arith.constant 0 : index
    %22 = vector.load %arg3[%c0_9, %c0_10] : memref<1x128xf32, #tpu.memory_space<vmem>>, vector<1x128xf32>
    %23 = vector.broadcast %22 : vector<1x128xf32> to vector<8x128xf32>
    %24 = arith.addf %21, %23 : vector<8x128xf32>
    %25 = arith.addf %0, %24 : vector<8x128xf32>
    %cst_11 = arith.constant dense<0.000000e+00> : vector<8xf32>
    %26 = vector.multi_reduction <add>, %25, %cst_11 [1] : vector<8x128xf32> to vector<8xf32>
    %27 = vector.shape_cast %26 : vector<8xf32> to vector<8x1xf32>
    %cst_12 = arith.constant 1.280000e+02 : f32
    %28 = vector.broadcast %cst_12 : f32 to vector<8x1xf32>
    %29 = arith.divf %27, %28 : vector<8x1xf32>
    %30 = vector.broadcast %29 : vector<8x1xf32> to vector<8x128xf32>
    %31 = arith.subf %25, %30 : vector<8x128xf32>
    %32 = arith.mulf %31, %31 : vector<8x128xf32>
    %cst_13 = arith.constant dense<0.000000e+00> : vector<8xf32>
    %33 = vector.multi_reduction <add>, %32, %cst_13 [1] : vector<8x128xf32> to vector<8xf32>
    %34 = vector.shape_cast %33 : vector<8xf32> to vector<8x1xf32>
    %cst_14 = arith.constant 0.00787401571 : f32
    %35 = vector.broadcast %cst_14 : f32 to vector<8x1xf32>
    %36 = arith.mulf %34, %35 : vector<8x1xf32>
    %37 = math.sqrt %36 : vector<8x1xf32>
    %cst_15 = arith.constant 9.99999997E-7 : f32
    %38 = vector.broadcast %cst_15 : f32 to vector<8x1xf32>
    %39 = arith.addf %37, %38 : vector<8x1xf32>
    %cst_16 = arith.constant 1.000000e+00 : f32
    %40 = vector.broadcast %cst_16 : f32 to vector<8x1xf32>
    %41 = arith.divf %40, %39 : vector<8x1xf32>
    %42 = vector.broadcast %41 : vector<8x1xf32> to vector<8x128xf32>
    %43 = arith.mulf %31, %42 : vector<8x128xf32>
    %44 = arith.truncf %43 : vector<8x128xf32> to vector<8x128xbf16>
    %c0_17 = arith.constant 0 : index
    %c0_18 = arith.constant 0 : index
    %45 = vector.load %arg4[%c0_17, %c0_18] : memref<128x128xbf16, #tpu.memory_space<vmem>>, vector<128x128xbf16>
    %cst_19 = arith.constant dense<0.000000e+00> : vector<8x128xf32>
    %46 = tpu.matmul %44, %45, %cst_19 {dimension_numbers = #tpu.dot_dimension_numbers<[1], [0], [0], [1], [0, 0, 1, 1], [], []>} : vector<8x128xbf16>, vector<128x128xbf16>, vector<8x128xf32> -> vector<8x128xf32>
    %c0_20 = arith.constant 0 : index
    %c0_21 = arith.constant 0 : index
    %47 = vector.load %arg5[%c0_20, %c0_21] : memref<1x128xf32, #tpu.memory_space<vmem>>, vector<1x128xf32>
    %48 = vector.broadcast %47 : vector<1x128xf32> to vector<8x128xf32>
    %49 = arith.addf %46, %48 : vector<8x128xf32>
    %50 = arith.addf %25, %49 : vector<8x128xf32>
    %c0_22 = arith.constant 0 : index
    %c0_23 = arith.constant 0 : index
    %51 = vector.load %arg6[%c0_22, %c0_23] : memref<8x128xf32, #tpu.memory_space<vmem>>, vector<8x128xf32>
    tpu.vector_store %arg6[%c0_22, %c0_23], %50 {strides = array<i32>} : memref<8x128xf32, #tpu.memory_space<vmem>>, vector<8x128xf32>,
    return
  }
  func.func @transform_0(%arg0: i32) -> (i32, i32) {
    %c0_i32 = arith.constant 0 : i32
    %c0_i32_0 = arith.constant 0 : i32
    return %arg0, %c0_i32 : i32, i32
  }
  func.func @transform_1(%arg0: i32) -> (i32, i32) {
    %c0_i32 = arith.constant 0 : i32
    %c0_i32_0 = arith.constant 0 : i32
    %c0_i32_1 = arith.constant 0 : i32
    return %c0_i32, %c0_i32_0 : i32, i32
  }
  func.func @transform_2(%arg0: i32) -> (i32, i32) {
    %c0_i32 = arith.constant 0 : i32
    %c0_i32_0 = arith.constant 0 : i32
    %c0_i32_1 = arith.constant 0 : i32
    return %c0_i32, %c0_i32_0 : i32, i32
  }
  func.func @transform_3(%arg0: i32) -> (i32, i32) {
    %c0_i32 = arith.constant 0 : i32
    %c0_i32_0 = arith.constant 0 : i32
    %c0_i32_1 = arith.constant 0 : i32
    return %c0_i32, %c0_i32_0 : i32, i32
  }
  func.func @transform_4(%arg0: i32) -> (i32, i32) {
    %c0_i32 = arith.constant 0 : i32
    %c0_i32_0 = arith.constant 0 : i32
    %c0_i32_1 = arith.constant 0 : i32
    return %c0_i32, %c0_i32_0 : i32, i32
  }
  func.func @transform_5(%arg0: i32) -> (i32, i32) {
    %c0_i32 = arith.constant 0 : i32
    %c0_i32_0 = arith.constant 0 : i32
    return %arg0, %c0_i32 : i32, i32
  }
}

</mosaic_0001>

<llo_original>
// kernel: _encoder_layer_rows.1
$region0: #{_encoder_layer_rows.1}
  #allocation0 [shape = 'u32[]', space=smem, size = 0x4, offset = 0x4, fixed_abs, tag = 'smem constant byte address 0x4 - core index']
  #allocation1 [shape = 'u32[144,128]{1,0:T(1,128)}', space=vmem, size = 0x12000, scoped, tag = 'internal scratch']
  %s0 = inlined_call_operand.hbm [shape: f32[16,128], index: 0, kind: input, shape index: {}]
  %s1 = inlined_call_operand.hbm [shape: bf16[128,128], index: 1, kind: input, shape index: {}]
  %s2 = inlined_call_operand.vmem [shape: f32[1,128], index: 2, kind: input, shape index: {}]
  %s3 = inlined_call_operand.hbm [shape: bf16[128,128], index: 3, kind: input, shape index: {}]
  %s4 = inlined_call_operand.vmem [shape: f32[1,128], index: 4, kind: input, shape index: {}]
  %s5 = inlined_call_operand.hbm [shape: f32[16,128], index: 5, kind: output, shape index: {}]
  %s6 = sld [smem:[#allocation0]]
  $region65: #{_encoder_layer_rows.1} parent=0
    _
  %s8 = ssub.s32 1, %s6
  %s9 = scalar_select 0, %s8, %s6
  $region1: #{_encoder_layer_rows.1} parent=0
    #allocation2 [shape = 'u8[8192]{0}', space=vmem, size = 0x2000, scoped, tag = 'input window, operand 0']
    #allocation3 [shape = 's32[2]{0}', space=sflag, size = 0x8, scoped, tag = 'scoped memory for _encoder_layer_rows.1']
    #allocation4 [shape = 's32[2]{0}', space=sflag, size = 0x8, scoped, tag = 'scoped memory for _encoder_layer_rows.1']
    #allocation5 [shape = 'u8[32768]{0}', space=vmem, size = 0x8000, scoped, tag = 'input window, operand 1, single buffered']
    #allocation6 [shape = 's32[1]{0}', space=sflag, size = 0x4, scoped, tag = 'scoped memory for _encoder_layer_rows.1']
    #allocation7 [shape = 'u8[32768]{0}', space=vmem, size = 0x8000, scoped, tag = 'input window, operand 3, single buffered']
    #allocation8 [shape = 'u8[8192]{0}', space=vmem, size = 0x2000, scoped, tag = 'output window, operand 0']
    %10 = vsyncpa [#allocation3], 0
    %s11 = scalar_lea.sflag [#allocation3], 1
    %12 = vsyncpa %s11, 0
    %13 = vsyncpa [#allocation6], 0
    %14 = vsyncpa [#allocation4], 0
    %s15 = scalar_lea.sflag [#allocation4], 1
    %16 = vsyncpa %s15, 0
    loop: start=0, step=1, limit=4
    $region2: #{_encoder_layer_rows.1} parent=1 // loop_pre_header
      _
    $region3: #{_encoder_layer_rows.1} parent=1 // loop_header
      %s18 = sphi 0, %s22
      %p19 = scmp.ge.s32.totalorder %s18, 4
      %s28 = sphi 0, %s30
      %s31 = sphi 0, %s28
      %s32 = sphi 0, %s31
      %s48 = sphi 0, %s32
      %s52 = sphi 0, %s52
      %s54 = sphi 0, %s52
      %s55 = sphi 0, %s54
      %s69 = sphi 0, %s55
      %s73 = sphi 0, %s73
      %s75 = sphi 0, %s73
      %s76 = sphi 0, %s75
      %s90 = sphi 0, %s76
      %s94 = sphi 0, %s94
      %s96 = sphi 0, %s94
      %s97 = sphi 0, %s96
      %s111 = sphi 0, %s97
      %s115 = sphi 0, %s115
      %s117 = sphi 0, %s115
      %s118 = sphi 0, %s117
      %s132 = sphi 0, %s118
      %s138 = sphi 0, %s140
      %s141 = sphi 0, %s138
      %s142 = sphi 0, %s141
      %s158 = sphi 0, %s142
    $region4: #{_encoder_layer_rows.1} parent=1 // loop_header_branch
      %21 = sbr.rel (%p19) target = $region8
    $region5: #{_encoder_layer_rows.1} parent=1 // loop_body
      %s23 = ssub.s32 %s18, 1
      %s24 = ssub.s32 %s18, 2
      %s25 = sadd.s32 %s18, 1
      %s26 = ssub.s32 %s18, %s25
      %p27 = scmp.eq.s32.totalorder %s26, 0
      %s29 = sadd.s32 %s28, 1
      %s30 = scalar_select %p27, %s28, %s29
      %p33 = pneg %p27
      %p34 = scmp.eq.s32.totalorder %s18, 1
      %p35 = por %p33, %p34
      %p36 = scmp.ne.s32.totalorder %s28, %s31
      %p37 = scmp.eq.s32.totalorder %s18, 0
      %p38 = por %p36, %p37
      %p39 = scmp.ne.s32.totalorder %s28, %s31
      %p40 = scmp.eq.s32.totalorder %s23, 1
      %p41 = por %p39, %p40
      %p42 = scmp.ne.s32.totalorder %s31, %s32
      %p43 = scmp.eq.s32.totalorder %s23, 0
      %p44 = por %p42, %p43
      %p45 = scmp.ne.s32.totalorder %s31, %s32
      %p46 = scmp.eq.s32.totalorder %s24, 1
      %p47 = por %p45, %p46
      %p49 = scmp.ne.s32.totalorder %s32, %s48
      %p50 = scmp.eq.s32.totalorder %s24, 0
      %p51 = por %p49, %p50
      %s53 = sadd.s32 %s52, 1
      %p56 = scmp.eq.s32.totalorder %s18, 1
      %p57 = scmp.ne.s32.totalorder %s52, %s54
      %p58 = scmp.eq.s32.totalorder %s18, 0
      %p59 = por %p57, %p58
      %p60 = scmp.ne.s32.totalorder %s52, %s54
      %p61 = scmp.eq.s32.totalorder %s23, 1
      %p62 = por %p60, %p61
      %p63 = scmp.ne.s32.totalorder %s54, %s55
      %p64 = scmp.eq.s32.totalorder %s23, 0
      %p65 = por %p63, %p64
      %p66 = scmp.ne.s32.totalorder %s54, %s55
      %p67 = scmp.eq.s32.totalorder %s24, 1
      %p68 = por %p66, %p67
      %p70 = scmp.ne.s32.totalorder %s55, %s69
      %p71 = scmp.eq.s32.totalorder %s24, 0
      %p72 = por %p70, %p71
      %s74 = sadd.s32 %s73, 1
      %p77 = scmp.eq.s32.totalorder %s18, 1
      %p78 = scmp.ne.s32.totalorder %s73, %s75
      %p79 = scmp.eq.s32.totalorder %s18, 0
      %p80 = por %p78, %p79
      %p81 = scmp.ne.s32.totalorder %s73, %s75
      %p82 = scmp.eq.s32.totalorder %s23, 1
      %p83 = por %p81, %p82
      %p84 = scmp.ne.s32.totalorder %s75, %s76
      %p85 = scmp.eq.s32.totalorder %s23, 0
      %p86 = por %p84, %p85
      %p87 = scmp.ne.s32.totalorder %s75, %s76
      %p88 = scmp.eq.s32.totalorder %s24, 1
      %p89 = por %p87, %p88
      %p91 = scmp.ne.s32.totalorder %s76, %s90
      %p92 = scmp.eq.s32.totalorder %s24, 0
      %p93 = por %p91, %p92
      %s95 = sadd.s32 %s94, 1
      %p98 = scmp.eq.s32.totalorder %s18, 1
      %p99 = scmp.ne.s32.totalorder %s94, %s96
      %p100 = scmp.eq.s32.totalorder %s18, 0
      %p101 = por %p99, %p100
      %p102 = scmp.ne.s32.totalorder %s94, %s96
      %p103 = scmp.eq.s32.totalorder %s23, 1
      %p104 = por %p102, %p103
      %p105 = scmp.ne.s32.totalorder %s96, %s97
      %p106 = scmp.eq.s32.totalorder %s23, 0
      %p107 = por %p105, %p106
      %p108 = scmp.ne.s32.totalorder %s96, %s97
      %p109 = scmp.eq.s32.totalorder %s24, 1
      %p110 = por %p108, %p109
      %p112 = scmp.ne.s32.totalorder %s97, %s111
      %p113 = scmp.eq.s32.totalorder %s24, 0
      %p114 = por %p112, %p113
      %s116 = sadd.s32 %s115, 1
      %p119 = scmp.eq.s32.totalorder %s18, 1
      %p120 = scmp.ne.s32.totalorder %s115, %s117
      %p121 = scmp.eq.s32.totalorder %s18, 0
      %p122 = por %p120, %p121
      %p123 = scmp.ne.s32.totalorder %s115, %s117
      %p124 = scmp.eq.s32.totalorder %s23, 1
      %p125 = por %p123, %p124
      %p126 = scmp.ne.s32.totalorder %s117, %s118
      %p127 = scmp.eq.s32.totalorder %s23, 0
      %p128 = por %p126, %p127
      %p129 = scmp.ne.s32.totalorder %s117, %s118
      %p130 = scmp.eq.s32.totalorder %s24, 1
      %p131 = por %p129, %p130
      %p133 = scmp.ne.s32.totalorder %s118, %s132
      %p134 = scmp.eq.s32.totalorder %s24, 0
      %p135 = por %p133, %p134
      %s136 = ssub.s32 %s18, %s25
      %p137 = scmp.eq.s32.totalorder %s136, 0
      %s139 = sadd.s32 %s138, 1
      %s140 = scalar_select %p137, %s138, %s139
      %p143 = pneg %p137
      %p144 = scmp.eq.s32.totalorder %s18, 1
      %p145 = por %p143, %p144
      %p146 = scmp.ne.s32.totalorder %s138, %s141
      %p147 = scmp.eq.s32.totalorder %s18, 0
      %p148 = por %p146, %p147
      %p149 = scmp.ne.s32.totalorder %s138, %s141
      %p150 = scmp.eq.s32.totalorder %s23, 1
      %p151 = por %p149, %p150
      %p152 = scmp.ne.s32.totalorder %s141, %s142
      %p153 = scmp.eq.s32.totalorder %s23, 0
      %p154 = por %p152, %p153
      %p155 = scmp.ne.s32.totalorder %s141, %s142
      %p156 = scmp.eq.s32.totalorder %s24, 1
      %p157 = por %p155, %p156
      %p159 = scmp.ne.s32.totalorder %s142, %s158
      %p160 = scmp.eq.s32.totalorder %s24, 0
      %p161 = por %p159, %p160
      %p162 = scmp.le.s32.totalorder 1, %s18
      %p163 = scmp.lt.s32.totalorder %s18, 3
      %p164 = pnand %p162, %p163
      %p165 = pneg %p164
      // Predicated region
      $region9: #{_encoder_layer_rows.1} parent=5 // pred_check
        _
      $region10: #{_encoder_layer_rows.1} parent=5 // pred_check_branch
        %167 = sbr.rel (%p164) target = $region12
      $region11: #{_encoder_layer_rows.1} parent=5 // pred_region
        %s168 = ssub.s32 %s18, 1
        // Predicated region
        $region13: #{_encoder_layer_rows.1} parent=11 // pred_check
          %p169 = pneg %p65
        $region14: #{_encoder_layer_rows.1} parent=11 // pred_check_branch
          %171 = sbr.rel (%p169) target = $region16
        $region15: #{_encoder_layer_rows.1} parent=11 // pred_region
          %s173 = ssub.s32 1024, 1024
          %174 = vsyncadd [#allocation6], %s173
          %s175 = sshll.u32 [#allocation5], 4
          %s176 = int_to_ptr.vmem [resolvable:$true] %s175
          %181 = dma.hbm_to_vmem [thread:$0]  %s1, 1024, %s176, [#allocation6], 64, 64, 4
        $region16: #{_encoder_layer_rows.1} parent=11 // pred_fallthru
          _
        // Predicated region
        $region17: #{_encoder_layer_rows.1} parent=11 // pred_check
          %p182 = pneg %p86
        $region18: #{_encoder_layer_rows.1} parent=11 // pred_check_branch
          %184 = sbr.rel (%p182) target = $region20
        $region19: #{_encoder_layer_rows.1} parent=11 // pred_region
          _
        $region20: #{_encoder_layer_rows.1} parent=11 // pred_fallthru
          _
        // Predicated region
        $region21: #{_encoder_layer_rows.1} parent=11 // pred_check
          %p185 = pneg %p107
        $region22: #{_encoder_layer_rows.1} parent=11 // pred_check_branch
          %187 = sbr.rel (%p185) target = $region24
        $region23: #{_encoder_layer_rows.1} parent=11 // pred_region
          %s189 = ssub.s32 1024, 1024
          %190 = vsyncadd [#allocation6], %s189
          %s191 = sshll.u32 [#allocation7], 4
          %s192 = int_to_ptr.vmem [resolvable:$true] %s191
          %197 = dma.hbm_to_vmem [thread:$0]  %s3, 1024, %s192, [#allocation6], 64, 64, 4
        $region24: #{_encoder_layer_rows.1} parent=11 // pred_fallthru
          _
        // Predicated region
        $region25: #{_encoder_layer_rows.1} parent=11 // pred_check
          %p198 = pneg %p128
        $region26: #{_encoder_layer_rows.1} parent=11 // pred_check_branch
          %200 = sbr.rel (%p198) target = $region28
        $region27: #{_encoder_layer_rows.1} parent=11 // pred_region
          _
        $region28: #{_encoder_layer_rows.1} parent=11 // pred_fallthru
          _
      $region12: #{_encoder_layer_rows.1} parent=5 // pred_fallthru
        _
      %p201 = scmp.lt.s32.totalorder %s18, 2
      // Predicated region
      $region29: #{_encoder_layer_rows.1} parent=5 // pred_check
        %p202 = pneg %p201
      $region30: #{_encoder_layer_rows.1} parent=5 // pred_check_branch
        %204 = sbr.rel (%p202) target = $region32
      $region31: #{_encoder_layer_rows.1} parent=5 // pred_region
        // Predicated region
        $region33: #{_encoder_layer_rows.1} parent=31 // pred_check
          %p205 = pneg %p38
        $region34: #{_encoder_layer_rows.1} parent=31 // pred_check_branch
          %207 = sbr.rel (%p205) target = $region36
        $region35: #{_encoder_layer_rows.1} parent=31 // pred_region
          %s208 = sand.u32 %s28, 1
          %s209 = scalar_lea.sflag [#allocation3], %s208
          %s210 = sand.u32 %s28, 1
          %s211 = smul.addr %s210, 8
          %s212 = scalar_lea.vmem [#allocation2], %s211
          %s214 = ssub.s32 128, 128
          %215 = vsyncadd %s209, %s214
          %s216 = smul.addr %s18, 128
          %s217 = scalar_lea.hbm %s0, %s216
          %s219 = sshll.u32 %s212, 4
          %s220 = int_to_ptr.vmem [resolvable:$true] %s219
          %222 = dma.hbm_to_vmem [thread:$0]  %s217, 128, %s220, %s209
        $region36: #{_encoder_layer_rows.1} parent=31 // pred_fallthru
          _
      $region32: #{_encoder_layer_rows.1} parent=5 // pred_fallthru
        _
      %p223 = scmp.le.s32.totalorder 1, %s18
      %p224 = scmp.lt.s32.totalorder %s18, 3
      %p225 = pnand %p223, %p224
      %p226 = pneg %p225
      // Predicated region
      $region37: #{_encoder_layer_rows.1} parent=5 // pred_check
        _
      $region38: #{_encoder_layer_rows.1} parent=5 // pred_check_branch
        %228 = sbr.rel (%p225) target = $region40
      $region39: #{_encoder_layer_rows.1} parent=5 // pred_region
        %s229 = ssub.s32 %s18, 1
        %s230 = sand.u32 %s31, 1
        %s231 = scalar_lea.sflag [#allocation3], %s230
        %s232 = sand.u32 %s31, 1
        %s233 = smul.addr %s232, 8
        %s234 = scalar_lea.vmem [#allocation2], %s233
        // Predicated region
        $region41: #{_encoder_layer_rows.1} parent=39 // pred_check
          %p235 = pneg %p44
        $region42: #{_encoder_layer_rows.1} parent=39 // pred_check_branch
          %237 = sbr.rel (%p235) target = $region44
        $region43: #{_encoder_layer_rows.1} parent=39 // pred_region
          %238 = dma.done %s231, 128
        $region44: #{_encoder_layer_rows.1} parent=39 // pred_fallthru
          _
        // Predicated region
        $region45: #{_encoder_layer_rows.1} parent=39 // pred_check
          %p239 = pneg %p65
        $region46: #{_encoder_layer_rows.1} parent=39 // pred_check_branch
          %241 = sbr.rel (%p239) target = $region48
        $region47: #{_encoder_layer_rows.1} parent=39 // pred_region
          %242 = dma.done [#allocation6], 1024
        $region48: #{_encoder_layer_rows.1} parent=39 // pred_fallthru
          _
        // Predicated region
        $region49: #{_encoder_layer_rows.1} parent=39 // pred_check
          %p243 = pneg %p107
        $region50: #{_encoder_layer_rows.1} parent=39 // pred_check_branch
          %245 = sbr.rel (%p243) target = $region52
        $region51: #{_encoder_layer_rows.1} parent=39 // pred_region
          %246 = dma.done [#allocation6], 1024
        $region52: #{_encoder_layer_rows.1} parent=39 // pred_fallthru
          _
        %s247 = sand.u32 %s31, 1
        %s248 = scalar_lea.sflag [#allocation3], %s247
        %s249 = sand.u32 %s31, 1
        %s250 = smul.addr %s249, 8
        %s251 = scalar_lea.vmem [#allocation2], %s250
        %p252 = pneg %p44
        %p253 = pneg %p41
        %p254 = pneg %p65
        %p255 = pneg %p62
        %p256 = pneg %p86
        %p257 = pneg %p83
        %p258 = pneg %p107
        %p259 = pneg %p104
        %p260 = pneg %p128
        %p261 = pneg %p125
        %p262 = pneg %p154
        %p263 = pneg %p151
        %s264 = sand.u32 %s141, 1
        %s265 = scalar_lea.sflag [#allocation4], %s264
        %s266 = sand.u32 %s141, 1
        %s267 = smul.addr %s266, 8
        %s268 = scalar_lea.vmem [#allocation8], %s267
        %v270 = vld [vmem:[%s234] sm:$0xff]
        %271 = vadd.xlane.f32.xlu0 %v270
        %v272 = vpop.xlane.xlu0 %271
        %v273 = vrcp.pop 128.0
        %v274 = vmul.f32 %v272, %v273
        %v275 = vsub.f32 %v270, %v274
        %v276 = vmul.f32 %v275, %v275
        %277 = vadd.xlane.f32.xlu0 %v276
        %v278 = vpop.xlane.xlu0 %277
        %v279 = vmul.f32 %v278, 0.007874016
        %v280 = vrsqrt.pop %v279
        %v281 = vmul.f32 %v279, %v280
        %vm282 = vcmp.eq.f32.partialorder %v279, inf
        %v283 = vsel %vm282, %v279, %v281
        %vm284 = vcmp.eq.f32.partialorder %v279, 0.0
        %v285 = vand.u32 %v279, 2147483648
        %v286 = vsel %vm284, %v285, %v283
        %v287 = vadd.f32 %v286, 1e-06
        %v288 = vrcp.pop %v287
        %v289 = vmul.f32 1.0, %v288
        %v290 = vmul.f32 %v275, %v289
        %v291 = vpack.c.bf16 %v290, %v290
        %v292 = vld [vmem:[#allocation5] sm:$0xf]
        %v293 = vld [vmem:[#allocation5 + $0x4] sm:$0xf]
        %v294 = vld [vmem:[#allocation5 + $0x8] sm:$0xf]
        %v295 = vld [vmem:[#allocation5 + $0xc] sm:$0xf]
        %v296 = vld [vmem:[#allocation5 + $0x10] sm:$0xf]
        %v297 = vld [vmem:[#allocation5 + $0x14] sm:$0xf]
        %v298 = vld [vmem:[#allocation5 + $0x18] sm:$0xf]
        %v299 = vld [vmem:[#allocation5 + $0x1c] sm:$0xf]
        %v300 = vld [vmem:[#allocation5 + $0x20] sm:$0xf]
        %v301 = vld [vmem:[#allocation5 + $0x24] sm:$0xf]
        %v302 = vld [vmem:[#allocation5 + $0x28] sm:$0xf]
        %v303 = vld [vmem:[#allocation5 + $0x2c] sm:$0xf]
        %v304 = vld [vmem:[#allocation5 + $0x30] sm:$0xf]
        %v305 = vld [vmem:[#allocation5 + $0x34] sm:$0xf]
        %v306 = vld [vmem:[#allocation5 + $0x38] sm:$0xf]
        %v307 = vld [vmem:[#allocation5 + $0x3c] sm:$0xf]
        %v308 = vld [vmem:[%s2] sm:$0x1]
        %v310 = vlaneseq
        %v311 = vshrl.u32 %v310, 7
        %v312 = vsub.s32 0, %v311
        %v313 = vrot.slane %v308, %v312
        %v331 = vunpack.c.l.b16 %v292
        %v332 = vunpack.c.l.b16 %v293
        %v333 = vunpack.c.l.b16 %v294
        %v334 = vunpack.c.l.b16 %v295
        %v335 = vunpack.c.l.b16 %v296
        %v336 = vunpack.c.l.b16 %v297
        %v337 = vunpack.c.l.b16 %v298
        %v338 = vunpack.c.l.b16 %v299
        %v339 = vunpack.c.l.b16 %v300
        %v340 = vunpack.c.l.b16 %v301
        %v341 = vunpack.c.l.b16 %v302
        %v342 = vunpack.c.l.b16 %v303
        %v343 = vunpack.c.l.b16 %v304
        %v344 = vunpack.c.l.b16 %v305
        %v345 = vunpack.c.l.b16 %v306
        %v346 = vunpack.c.l.b16 %v307
        %v347 = vpack.c.b16 %v332, %v331
        %v348 = vpack.c.b16 %v334, %v333
        %v349 = vpack.c.b16 %v336, %v335
        %v350 = vpack.c.b16 %v338, %v337
        %v351 = vpack.c.b16 %v340, %v339
        %v352 = vpack.c.b16 %v342, %v341
        %v353 = vpack.c.b16 %v344, %v343
        %v354 = vpack.c.b16 %v346, %v345
        %363 = vmatprep.subr.bf16.mxu0 0
        %364 = vmatpush1.bf16.msra.mxu0 %v347
        %365 = vmatprep.subr.bf16.mxu0 0
        %366 = vmatpush1.bf16.msra.mxu0 %v348
        %367 = vmatprep.subr.bf16.mxu0 0
        %368 = vmatpush1.bf16.msra.mxu0 %v349
        %369 = vmatprep.subr.bf16.mxu0 0
        %370 = vmatpush1.bf16.msra.mxu0 %v350
        %371 = vmatprep.subr.bf16.mxu0 0
        %372 = vmatpush1.bf16.msra.mxu0 %v351
        %373 = vmatprep.subr.bf16.mxu0 0
        %374 = vmatpush1.bf16.msra.mxu0 %v352
        %375 = vmatprep.subr.bf16.mxu0 0
        %376 = vmatpush1.bf16.msra.mxu0 %v353
        %377 = vmatprep.subr.bf16.mxu0 0
        %378 = vmatpush1.bf16.msra.mxu0 %v354
        %379 = vmatprep.subr.bf16.mxu0 0
        %380 = vmatpush1.bf16.msra.mxu0 0
        %381 = vmatprep.subr.bf16.mxu0 0
        %382 = vmatpush1.bf16.msra.mxu0 0
        %383 = vmatprep.subr.bf16.mxu0 0
        %384 = vmatpush1.bf16.msra.mxu0 0
        %385 = vmatprep.subr.bf16.mxu0 0
        %386 = vmatpush1.bf16.msra.mxu0 0
        %387 = vmatprep.subr.bf16.mxu0 0
        %388 = vmatpush1.bf16.msra.mxu0 0
        %389 = vmatprep.subr.bf16.mxu0 0
        %390 = vmatpush1.bf16.msra.mxu0 0
        %391 = vmatprep.subr.bf16.mxu0 0
        %392 = vmatpush1.bf16.msra.mxu0 0
        %393 = vmatprep.subr.bf16.mxu0 0
        %394 = vmatpush1.bf16.msra.mxu0 0
        %395 = vmatprep.mubr.bf16.mxu0 0
        %396 = vmatmul.mubr.bf16.gmra.mrb[0].mxu0 %v291
        %v397 = vpop.f32.mrb[0].mxu0
        %v398 = vadd.f32 %v313, %v397
        %v399 = vpop.f32.mrb[0].mxu0
        %v400 = vpop.f32.mrb[0].mxu0
        %v401 = vpop.f32.mrb[0].mxu0
        %402 = vdwg.mxu0
        %v403 = vadd.f32 %v270, %v398
        %404 = vadd.xlane.f32.xlu0 %v403
        %v405 = vpop.xlane.xlu0 %404
        %v406 = vmul.f32 %v405, %v273
        %v407 = vsub.f32 %v403, %v406
        %v408 = vmul.f32 %v407, %v407
        %409 = vadd.xlane.f32.xlu0 %v408
        %v410 = vpop.xlane.xlu0 %409
        %v411 = vmul.f32 %v410, 0.007874016
        %v412 = vrsqrt.pop %v411
        %v413 = vmul.f32 %v411, %v412
        %vm414 = vcmp.eq.f32.partialorder %v411, inf
        %v415 = vsel %vm414, %v411, %v413
        %vm416 = vcmp.eq.f32.partialorder %v411, 0.0
        %v417 = vand.u32 %v411, 2147483648
        %v418 = vsel %vm416, %v417, %v415
        %v419 = vadd.f32 %v418, 1e-06
        %v420 = vrcp.pop %v419
        %v421 = vmul.f32 1.0, %v420
        %v422 = vmul.f32 %v407, %v421
        %v423 = vpack.c.bf16 %v422, %v422
        %v424 = vld [vmem:[#allocation7] sm:$0xf]
        %v425 = vld [vmem:[#allocation7 + $0x4] sm:$0xf]
        %v426 = vld [vmem:[#allocation7 + $0x8] sm:$0xf]
        %v427 = vld [vmem:[#allocation7 + $0xc] sm:$0xf]
        %v428 = vld [vmem:[#allocation7 + $0x10] sm:$0xf]
        %v429 = vld [vmem:[#allocation7 + $0x14] sm:$0xf]
        %v430 = vld [vmem:[#allocation7 + $0x18] sm:$0xf]
        %v431 = vld [vmem:[#allocation7 + $0x1c] sm:$0xf]
        %v432 = vld [vmem:[#allocation7 + $0x20] sm:$0xf]
        %v433 = vld [vmem:[#allocation7 + $0x24] sm:$0xf]
        %v434 = vld [vmem:[#allocation7 + $0x28] sm:$0xf]
        %v435 = vld [vmem:[#allocation7 + $0x2c] sm:$0xf]
        %v436 = vld [vmem:[#allocation7 + $0x30] sm:$0xf]
        %v437 = vld [vmem:[#allocation7 + $0x34] sm:$0xf]
        %v438 = vld [vmem:[#allocation7 + $0x38] sm:$0xf]
        %v439 = vld [vmem:[#allocation7 + $0x3c] sm:$0xf]
        %v440 = vld [vmem:[%s4] sm:$0x1]
        %v442 = vlaneseq
        %v443 = vshrl.u32 %v442, 7
        %v444 = vsub.s32 0, %v443
        %v445 = vrot.slane %v440, %v444
        %v463 = vunpack.c.l.b16 %v424
        %v464 = vunpack.c.l.b16 %v425
        %v465 = vunpack.c.l.b16 %v426
        %v466 = vunpack.c.l.b16 %v427
        %v467 = vunpack.c.l.b16 %v428
        %v468 = vunpack.c.l.b16 %v429
        %v469 = vunpack.c.l.b16 %v430
        %v470 = vunpack.c.l.b16 %v431
        %v471 = vunpack.c.l.b16 %v432
        %v472 = vunpack.c.l.b16 %v433
        %v473 = vunpack.c.l.b16 %v434
        %v474 = vunpack.c.l.b16 %v435
        %v475 = vunpack.c.l.b16 %v436
        %v476 = vunpack.c.l.b16 %v437
        %v477 = vunpack.c.l.b16 %v438
        %v478 = vunpack.c.l.b16 %v439
        %v479 = vpack.c.b16 %v464, %v463
        %v480 = vpack.c.b16 %v466, %v465
        %v481 = vpack.c.b16 %v468, %v467
        %v482 = vpack.c.b16 %v470, %v469
        %v483 = vpack.c.b16 %v472, %v471
        %v484 = vpack.c.b16 %v474, %v473
        %v485 = vpack.c.b16 %v476, %v475
        %v486 = vpack.c.b16 %v478, %v477
        %495 = vmatprep.subr.bf16.mxu0 0
        %496 = vmatpush1.bf16.msra.mxu0 %v479
        %497 = vmatprep.subr.bf16.mxu0 0
        %498 = vmatpush1.bf16.msra.mxu0 %v480
        %499 = vmatprep.subr.bf16.mxu0 0
        %500 = vmatpush1.bf16.msra.mxu0 %v481
        %501 = vmatprep.subr.bf16.mxu0 0
        %502 = vmatpush1.bf16.msra.mxu0 %v482
        %503 = vmatprep.subr.bf16.mxu0 0
        %504 = vmatpush1.bf16.msra.mxu0 %v483
        %505 = vmatprep.subr.bf16.mxu0 0
        %506 = vmatpush1.bf16.msra.mxu0 %v484
        %507 = vmatprep.subr.bf16.mxu0 0
        %508 = vmatpush1.bf16.msra.mxu0 %v485
        %509 = vmatprep.subr.bf16.mxu0 0
        %510 = vmatpush1.bf16.msra.mxu0 %v486
        %511 = vmatprep.subr.bf16.mxu0 0
        %512 = vmatpush1.bf16.msra.mxu0 0
        %513 = vmatprep.subr.bf16.mxu0 0
        %514 = vmatpush1.bf16.msra.mxu0 0
        %515 = vmatprep.subr.bf16.mxu0 0
        %516 = vmatpush1.bf16.msra.mxu0 0
        %517 = vmatprep.subr.bf16.mxu0 0
        %518 = vmatpush1.bf16.msra.mxu0 0
        %519 = vmatprep.subr.bf16.mxu0 0
        %520 = vmatpush1.bf16.msra.mxu0 0
        %521 = vmatprep.subr.bf16.mxu0 0
        %522 = vmatpush1.bf16.msra.mxu0 0
        %523 = vmatprep.subr.bf16.mxu0 0
        %524 = vmatpush1.bf16.msra.mxu0 0
        %525 = vmatprep.subr.bf16.mxu0 0
        %526 = vmatpush1.bf16.msra.mxu0 0
        %527 = vmatprep.mubr.bf16.mxu0 0
        %528 = vmatmul.mubr.bf16.gmra.mrb[0].mxu0 %v423
        %v529 = vpop.f32.mrb[0].mxu0
        %v530 = vadd.f32 %v445, %v529
        %v531 = vpop.f32.mrb[0].mxu0
        %v532 = vpop.f32.mrb[0].mxu0
        %v533 = vpop.f32.mrb[0].mxu0
        %534 = vdwg.mxu0
        %v535 = vadd.f32 %v403, %v530
        %536 = vst [vmem:[%s268] sm:$0xff] %v535
        %s537 = sand.u32 %s141, 1
        %s538 = scalar_lea.sflag [#allocation4], %s537
        %s539 = sand.u32 %s141, 1
        %s540 = smul.addr %s539, 8
        %s541 = scalar_lea.vmem [#allocation8], %s540
        // Predicated region
        $region53: #{_encoder_layer_rows.1} parent=39 // pred_check
          %p542 = pneg %p151
        $region54: #{_encoder_layer_rows.1} parent=39 // pred_check_branch
          %544 = sbr.rel (%p542) target = $region56
        $region55: #{_encoder_layer_rows.1} parent=39 // pred_region
          %s546 = ssub.s32 128, 128
          %547 = vsyncadd %s538, %s546
          %s548 = smul.addr %s23, 128
          %s549 = scalar_lea.hbm %s5, %s548
          %s551 = sshll.u32 %s541, 4
          %s552 = int_to_ptr.vmem [resolvable:$true] %s551
          %554 = dma.vmem_to_hbm [thread:$0]  %s552, 128, %s549, %s538
        $region56: #{_encoder_layer_rows.1} parent=39 // pred_fallthru
          _
      $region40: #{_encoder_layer_rows.1} parent=5 // pred_fallthru
        _
      %p555 = scmp.le.s32.totalorder 2, %s18
      // Predicated region
      $region57: #{_encoder_layer_rows.1} parent=5 // pred_check
        %p556 = pneg %p555
      $region58: #{_encoder_layer_rows.1} parent=5 // pred_check_branch
        %558 = sbr.rel (%p556) target = $region60
      $region59: #{_encoder_layer_rows.1} parent=5 // pred_region
        %s559 = ssub.s32 %s18, 2
        // Predicated region
        $region61: #{_encoder_layer_rows.1} parent=59 // pred_check
          %p560 = pneg %p157
        $region62: #{_encoder_layer_rows.1} parent=59 // pred_check_branch
          %562 = sbr.rel (%p560) target = $region64
        $region63: #{_encoder_layer_rows.1} parent=59 // pred_region
          %s563 = sand.u32 %s142, 1
          %s564 = scalar_lea.sflag [#allocation4], %s563
          %s565 = sand.u32 %s142, 1
          %s566 = smul.addr %s565, 8
          %s567 = scalar_lea.vmem [#allocation8], %s566
          %568 = dma.done %s564, 128
        $region64: #{_encoder_layer_rows.1} parent=59 // pred_fallthru
          _
      $region60: #{_encoder_layer_rows.1} parent=5 // pred_fallthru
        _
    $region6: #{_encoder_layer_rows.1} parent=1 // loop_footer
      %s22 = sadd.s32 1, %s18
    $region7: #{_encoder_layer_rows.1} parent=1 // loop_footer_branch
      %17 = sbr.rel target = $region3
    $region8: #{_encoder_layer_rows.1} parent=1 // loop_exit
      _
    %569 = vsyncpa [#allocation3], 1
    %s570 = scalar_lea.sflag [#allocation3], 1
    %571 = vsyncpa %s570, 1
    %572 = vsyncpa [#allocation6], 1
    %573 = vsyncpa [#allocation4], 1
    %s574 = scalar_lea.sflag [#allocation4], 1
    %575 = vsyncpa %s574, 1

</llo_original>
